<compile_context>
chip_gen: v7x
topology: tpu7x:2x2x1
jax: 0.10.0
libtpu: 0.0.40
codegen_flags: <defaults>
</compile_context>

<pallas_src>
from functools import partial

import jax
import jax.numpy as jnp
from jax.experimental import pallas as pl
from jax.experimental.pallas import tpu as pltpu

LN_EPS = 1e-5  # torch.nn.LayerNorm default


def _layernorm(x, gamma, beta):
    mean = jnp.mean(x, axis=-1, keepdims=True)
    var = jnp.mean((x - mean) ** 2, axis=-1, keepdims=True)
    return (x - mean) * jax.lax.rsqrt(var + LN_EPS) * gamma + beta


# --------------------------------------------------------------------------
# Fused SingleConditioning kernel (per (batch, row-tile) grid step)
# --------------------------------------------------------------------------
def single_conditioning_kernel(trunk_ref, inputs_ref, cond_ref,
                               g_single_ref, b_single_ref,
                               g_trans_ref, b_trans_ref, w1_ref, w2_ref,
                               out_ref, *, num_transitions, dim_inner):
    # concat on the lane axis (avoids a separate HBM concat pass)
    x = jnp.concatenate(
        [trunk_ref[0].astype(jnp.float32), inputs_ref[0].astype(jnp.float32)],
        axis=-1)                                               # (tn, ds)

    # LayerNorm(dim_single)
    x = _layernorm(x, g_single_ref[...], b_single_ref[...])    # (1, ds) broadcast

    # add per-batch fourier conditioning row
    x = x + cond_ref[0].astype(jnp.float32)                    # (1, ds) broadcast

    # num_transitions x (PreLayerNorm -> Linear -> SwiGLU -> Linear) + residual
    for t in range(num_transitions):                           # small static unroll
        y = _layernorm(x, g_trans_ref[t], b_trans_ref[t])
        h = jnp.dot(y, w1_ref[t], preferred_element_type=jnp.float32)  # (tn, 2*di)
        val = h[:, :dim_inner]
        gate = h[:, dim_inner:]
        act = val * (gate * jax.nn.sigmoid(gate))              # SwiGLU: silu(gate)*val
        x = x + jnp.dot(act, w2_ref[t], preferred_element_type=jnp.float32)

    out_ref[0] = x.astype(out_ref.dtype)


# --------------------------------------------------------------------------
# Wrapper
# --------------------------------------------------------------------------
def single_conditioning_forward(params, times, single_trunk_repr,
                                single_inputs_repr, *, row_tile=None):
    b, n, dst = single_trunk_repr.shape
    dsi = single_inputs_repr.shape[-1]
    ds = dst + dsi
    di = params["dim_inner"]
    nt = params["num_transitions"]

    # --- tiny per-batch Fourier conditioning path (plain JAX glue, O(b*dim_fourier)) ---
    tval = 0.25 * jnp.log(jnp.maximum(times / params["sigma_data"], params["eps"]))
    rand_proj = tval[:, None] * params["w_fourier"][None, :] + params["b_fourier"][None, :]
    fourier = jnp.cos(2.0 * jnp.pi * rand_proj)                         # (b, dim_fourier)
    fourier_ln = _layernorm(fourier, params["g_fourier"], params["b_fourier_ln"])
    cond = (fourier_ln @ params["w_f2s"])[:, None, :]                   # (b, 1, ds)

    if row_tile is None:
        row_tile = min(n, 256)
    assert n % row_tile == 0 and (row_tile % 8 == 0 or row_tile == n)

    g_single = params["g_single"].reshape(1, ds)
    b_single = params["b_single"].reshape(1, ds)
    g_trans = params["g_trans"]              # (nt, ds)
    b_trans = params["b_trans"]              # (nt, ds)
    w1 = params["w1"]                        # (nt, ds, 2*di)
    w2 = params["w2"]                        # (nt, di, ds)

    kernel = partial(single_conditioning_kernel,
                     num_transitions=nt, dim_inner=di)

    out = pl.pallas_call(
        kernel,
        out_shape=jax.ShapeDtypeStruct((b, n, ds), single_trunk_repr.dtype),
        grid=(b, n // row_tile),
        in_specs=[
            pl.BlockSpec((1, row_tile, dst), lambda bi, ni: (bi, ni, 0)),
            pl.BlockSpec((1, row_tile, dsi), lambda bi, ni: (bi, ni, 0)),
            pl.BlockSpec((1, 1, ds), lambda bi, ni: (bi, 0, 0)),
            pl.BlockSpec((1, ds), lambda bi, ni: (0, 0)),
            pl.BlockSpec((1, ds), lambda bi, ni: (0, 0)),
            pl.BlockSpec((nt, ds), lambda bi, ni: (0, 0)),
            pl.BlockSpec((nt, ds), lambda bi, ni: (0, 0)),
            pl.BlockSpec((nt, ds, 2 * di), lambda bi, ni: (0, 0, 0)),
            pl.BlockSpec((nt, di, ds), lambda bi, ni: (0, 0, 0)),
        ],
        out_specs=pl.BlockSpec((1, row_tile, ds), lambda bi, ni: (bi, ni, 0)),
        compiler_params=pltpu.CompilerParams(
            dimension_semantics=("parallel", "parallel"),
            vmem_limit_bytes=32 * 1024 * 1024,   # explicit; safe on v5e/v6e/v7x
        ),
    )(single_trunk_repr, single_inputs_repr, cond,
      g_single, b_single, g_trans, b_trans, w1, w2)
    return out


# --------------------------------------------------------------------------
# Pure-JAX reference (mirrors the PyTorch forward) for a correctness check
# --------------------------------------------------------------------------
def reference_forward(p, times, trunk, inputs):
    x = jnp.concatenate([trunk, inputs], axis=-1)
    x = _layernorm(x, p["g_single"], p["b_single"])
    tval = 0.25 * jnp.log(jnp.maximum(times / p["sigma_data"], p["eps"]))
    rand_proj = tval[:, None] * p["w_fourier"][None, :] + p["b_fourier"][None, :]
    fourier = jnp.cos(2.0 * jnp.pi * rand_proj)
    fourier_ln = _layernorm(fourier, p["g_fourier"], p["b_fourier_ln"])
    x = x + (fourier_ln @ p["w_f2s"])[:, None, :]
    di = p["dim_inner"]
    for t in range(p["num_transitions"]):
        y = _layernorm(x, p["g_trans"][t], p["b_trans"][t])
        h = y @ p["w1"][t]
        val, gate = h[..., :di], h[..., di:]
        x = x + (jax.nn.silu(gate) * val) @ p["w2"][t]
    return x


def init_params(key, *, dst, dsi, dim_fourier, num_transitions=2,
                expansion_factor=2, sigma_data=16.0, eps=1e-20):
    ds = dst + dsi
    di = int(ds * expansion_factor)
    ks = jax.random.split(key, 11)
    rnd = lambda k, shape, s=0.1: jax.random.normal(k, shape, jnp.float32) * s
    return {
        "sigma_data": jnp.float32(sigma_data),
        "eps": jnp.float32(eps),
        "num_transitions": num_transitions,
        "dim_inner": di,
        "g_single": 1.0 + rnd(ks[0], (ds,)),
        "b_single": rnd(ks[1], (ds,)),
        "w_fourier": rnd(ks[2], (dim_fourier,), 1.0),   # nn.Linear(1, dim_fourier).weight (frozen)
        "b_fourier": rnd(ks[3], (dim_fourier,), 1.0),
        "g_fourier": 1.0 + rnd(ks[4], (dim_fourier,)),
        "b_fourier_ln": rnd(ks[5], (dim_fourier,)),
        "w_f2s": rnd(ks[6], (dim_fourier, ds)),
        "g_trans": 1.0 + rnd(ks[7], (num_transitions, ds)),
        "b_trans": rnd(ks[8], (num_transitions, ds)),
        "w1": rnd(ks[9], (num_transitions, ds, 2 * di)),
        "w2": rnd(ks[10], (num_transitions, di, ds)),
    }


if __name__ == "__main__":
    b, n = 2, 16
    dst, dsi, dim_fourier = 16, 16, 16   # ds = dim_single = 32, dim_inner = 64

    key = jax.random.PRNGKey(0)
    k_t, k_trunk, k_inp, k_params = jax.random.split(key, 4)

    times = jax.random.uniform(k_t, (b,), jnp.float32, minval=0.1, maxval=2.0)
    trunk = jax.random.normal(k_trunk, (b, n, dst), jnp.float32)
    inputs = jax.random.normal(k_inp, (b, n, dsi), jnp.float32)
    params = init_params(k_params, dst=dst, dsi=dsi, dim_fourier=dim_fourier)

    out = single_conditioning_forward(params, times, trunk, inputs, row_tile=8)
    out = jax.block_until_ready(out)

    ref = jax.block_until_ready(reference_forward(params, times, trunk, inputs))
    max_err = float(jnp.max(jnp.abs(out - ref)))
    assert out.shape == (b, n, dst + dsi)
    assert max_err < 2e-3, f"mismatch vs reference: {max_err}"

    # TODO(synk): for production sizes, cast the W1/W2 matmul operands to bf16
    # (keeping f32 accumulation) and raise row_tile to 256-1024.
    print("KERNEL_OK")
</pallas_src>

<mosaic_0001>
module attributes {stable_mosaic.version = 11 : i64} {
  func.func @single_conditioning_kernel(%arg0: i32, %arg1: i32, %arg2: memref<1x8x16xf32, #tpu.memory_space<vmem>>, %arg3: memref<1x8x16xf32, #tpu.memory_space<vmem>>, %arg4: memref<1x1x32xf32, #tpu.memory_space<vmem>>, %arg5: memref<1x32xf32, #tpu.memory_space<vmem>>, %arg6: memref<1x32xf32, #tpu.memory_space<vmem>>, %arg7: memref<2x32xf32, #tpu.memory_space<vmem>>, %arg8: memref<2x32xf32, #tpu.memory_space<vmem>>, %arg9: memref<2x32x128xf32, #tpu.memory_space<vmem>>, %arg10: memref<2x64x32xf32, #tpu.memory_space<vmem>>, %arg11: memref<1x8x32xf32, #tpu.memory_space<vmem>>) attributes {dimension_semantics = [#tpu.dimension_semantics<parallel>, #tpu.dimension_semantics<parallel>], iteration_bounds = array<i64: 2, 2>, scalar_prefetch = 0 : i64, scratch_operands = 0 : i64, tpu.core_type = #tpu.core_type<tc>, window_params = [{transform_indices = @transform_0, window_bounds = array<i64: 1, 8, 16>}, {transform_indices = @transform_1, window_bounds = array<i64: 1, 8, 16>}, {transform_indices = @transform_2, window_bounds = array<i64: 1, 1, 32>}, {pipeline_mode = #tpu.pipeline_mode<synchronous>, transform_indices = @transform_3, window_bounds = array<i64: 1, 32>}, {pipeline_mode = #tpu.pipeline_mode<synchronous>, transform_indices = @transform_4, window_bounds = array<i64: 1, 32>}, {pipeline_mode = #tpu.pipeline_mode<synchronous>, transform_indices = @transform_5, window_bounds = array<i64: 2, 32>}, {pipeline_mode = #tpu.pipeline_mode<synchronous>, transform_indices = @transform_6, window_bounds = array<i64: 2, 32>}, {pipeline_mode = #tpu.pipeline_mode<synchronous>, transform_indices = @transform_7, window_bounds = array<i64: 2, 32, 128>}, {pipeline_mode = #tpu.pipeline_mode<synchronous>, transform_indices = @transform_8, window_bounds = array<i64: 2, 64, 32>}, {transform_indices = @transform_9, window_bounds = array<i64: 1, 8, 32>}]} {
    %c0 = arith.constant 0 : index
    %c0_0 = arith.constant 0 : index
    %c0_1 = arith.constant 0 : index
    %0 = vector.load %arg2[%c0, %c0_0, %c0_1] : memref<1x8x16xf32, #tpu.memory_space<vmem>>, vector<1x8x16xf32>
    %1 = vector.shape_cast %0 : vector<1x8x16xf32> to vector<8x16xf32>
    %c0_2 = arith.constant 0 : index
    %c0_3 = arith.constant 0 : index
    %c0_4 = arith.constant 0 : index
    %2 = vector.load %arg3[%c0_2, %c0_3, %c0_4] : memref<1x8x16xf32, #tpu.memory_space<vmem>>, vector<1x8x16xf32>
    %3 = vector.shape_cast %2 : vector<1x8x16xf32> to vector<8x16xf32>
    %4 = tpu.concatenate %1, %3 in 1 : vector<8x16xf32>, vector<8x16xf32> -> vector<8x32xf32>
    %c0_5 = arith.constant 0 : index
    %c0_6 = arith.constant 0 : index
    %5 = vector.load %arg5[%c0_5, %c0_6] : memref<1x32xf32, #tpu.memory_space<vmem>>, vector<1x32xf32>
    %c0_7 = arith.constant 0 : index
    %c0_8 = arith.constant 0 : index
    %6 = vector.load %arg6[%c0_7, %c0_8] : memref<1x32xf32, #tpu.memory_space<vmem>>, vector<1x32xf32>
    %cst = arith.constant dense<0.000000e+00> : vector<8xf32>
    %7 = vector.multi_reduction <add>, %4, %cst [1] : vector<8x32xf32> to vector<8xf32>
    %8 = vector.shape_cast %7 : vector<8xf32> to vector<8x1xf32>
    %cst_9 = arith.constant 3.200000e+01 : f32
    %9 = vector.broadcast %cst_9 : f32 to vector<8x1xf32>
    %10 = arith.divf %8, %9 : vector<8x1xf32>
    %11 = vector.broadcast %10 : vector<8x1xf32> to vector<8x32xf32>
    %12 = arith.subf %4, %11 : vector<8x32xf32>
    %13 = arith.mulf %12, %12 : vector<8x32xf32>
    %cst_10 = arith.constant dense<0.000000e+00> : vector<8xf32>
    %14 = vector.multi_reduction <add>, %13, %cst_10 [1] : vector<8x32xf32> to vector<8xf32>
    %15 = vector.shape_cast %14 : vector<8xf32> to vector<8x1xf32>
    %cst_11 = arith.constant 3.200000e+01 : f32
    %16 = vector.broadcast %cst_11 : f32 to vector<8x1xf32>
    %17 = arith.divf %15, %16 : vector<8x1xf32>
    %18 = vector.broadcast %10 : vector<8x1xf32> to vector<8x32xf32>
    %19 = arith.subf %4, %18 : vector<8x32xf32>
    %cst_12 = arith.constant 9.99999974E-6 : f32
    %20 = vector.broadcast %cst_12 : f32 to vector<8x1xf32>
    %21 = arith.addf %17, %20 : vector<8x1xf32>
    %22 = math.rsqrt %21 : vector<8x1xf32>
    %23 = vector.broadcast %22 : vector<8x1xf32> to vector<8x32xf32>
    %24 = arith.mulf %19, %23 : vector<8x32xf32>
    %25 = vector.broadcast %5 : vector<1x32xf32> to vector<8x32xf32>
    %26 = arith.mulf %24, %25 : vector<8x32xf32>
    %27 = vector.broadcast %6 : vector<1x32xf32> to vector<8x32xf32>
    %28 = arith.addf %26, %27 : vector<8x32xf32>
    %c0_13 = arith.constant 0 : index
    %c0_14 = arith.constant 0 : index
    %c0_15 = arith.constant 0 : index
    %29 = vector.load %arg4[%c0_13, %c0_14, %c0_15] : memref<1x1x32xf32, #tpu.memory_space<vmem>>, vector<1x1x32xf32>
    %30 = vector.shape_cast %29 : vector<1x1x32xf32> to vector<1x32xf32>
    %31 = vector.broadcast %30 : vector<1x32xf32> to vector<8x32xf32>
    %32 = arith.addf %28, %31 : vector<8x32xf32>
    %c0_16 = arith.constant 0 : index
    %c0_17 = arith.constant 0 : index
    %33 = vector.load %arg7[%c0_16, %c0_17] : memref<2x32xf32, #tpu.memory_space<vmem>>, vector<1x32xf32>
    %34 = vector.shape_cast %33 : vector<1x32xf32> to vector<32xf32>
    %c0_18 = arith.constant 0 : index
    %c0_19 = arith.constant 0 : index
    %35 = vector.load %arg8[%c0_18, %c0_19] : memref<2x32xf32, #tpu.memory_space<vmem>>, vector<1x32xf32>
    %36 = vector.shape_cast %35 : vector<1x32xf32> to vector<32xf32>
    %cst_20 = arith.constant dense<0.000000e+00> : vector<8xf32>
    %37 = vector.multi_reduction <add>, %32, %cst_20 [1] : vector<8x32xf32> to vector<8xf32>
    %38 = vector.shape_cast %37 : vector<8xf32> to vector<8x1xf32>
    %cst_21 = arith.constant 3.200000e+01 : f32
    %39 = vector.broadcast %cst_21 : f32 to vector<8x1xf32>
    %40 = arith.divf %38, %39 : vector<8x1xf32>
    %41 = vector.broadcast %40 : vector<8x1xf32> to vector<8x32xf32>
    %42 = arith.subf %32, %41 : vector<8x32xf32>
    %43 = arith.mulf %42, %42 : vector<8x32xf32>
    %cst_22 = arith.constant dense<0.000000e+00> : vector<8xf32>
    %44 = vector.multi_reduction <add>, %43, %cst_22 [1] : vector<8x32xf32> to vector<8xf32>
    %45 = vector.shape_cast %44 : vector<8xf32> to vector<8x1xf32>
    %cst_23 = arith.constant 3.200000e+01 : f32
    %46 = vector.broadcast %cst_23 : f32 to vector<8x1xf32>
    %47 = arith.divf %45, %46 : vector<8x1xf32>
    %48 = vector.broadcast %40 : vector<8x1xf32> to vector<8x32xf32>
    %49 = arith.subf %32, %48 : vector<8x32xf32>
    %cst_24 = arith.constant 9.99999974E-6 : f32
    %50 = vector.broadcast %cst_24 : f32 to vector<8x1xf32>
    %51 = arith.addf %47, %50 : vector<8x1xf32>
    %52 = math.rsqrt %51 : vector<8x1xf32>
    %53 = vector.broadcast %52 : vector<8x1xf32> to vector<8x32xf32>
    %54 = arith.mulf %49, %53 : vector<8x32xf32>
    %55 = vector.shape_cast %34 : vector<32xf32> to vector<1x32xf32>
    %56 = vector.broadcast %55 : vector<1x32xf32> to vector<8x32xf32>
    %57 = arith.mulf %54, %56 : vector<8x32xf32>
    %58 = vector.shape_cast %36 : vector<32xf32> to vector<1x32xf32>
    %59 = vector.broadcast %58 : vector<1x32xf32> to vector<8x32xf32>
    %60 = arith.addf %57, %59 : vector<8x32xf32>
    %c0_25 = arith.constant 0 : index
    %c0_26 = arith.constant 0 : index
    %c0_27 = arith.constant 0 : index
    %61 = vector.load %arg9[%c0_25, %c0_26, %c0_27] : memref<2x32x128xf32, #tpu.memory_space<vmem>>, vector<1x32x128xf32>
    %62 = vector.shape_cast %61 : vector<1x32x128xf32> to vector<32x128xf32>
    %cst_28 = arith.constant dense<0.000000e+00> : vector<8x128xf32>
    %63 = tpu.matmul %60, %62, %cst_28 {dimension_numbers = #tpu.dot_dimension_numbers<[1], [0], [0], [1], [0, 0, 1, 1], [], []>} : vector<8x32xf32>, vector<32x128xf32>, vector<8x128xf32> -> vector<8x128xf32>
    %64 = vector.extract_strided_slice %63 {offsets = [0, 0], sizes = [8, 64], strides = [1, 1]} : vector<8x128xf32> to vector<8x64xf32>
    %65 = vector.extract_strided_slice %63 {offsets = [0, 64], sizes = [8, 64], strides = [1, 1]} : vector<8x128xf32> to vector<8x64xf32>
    %66 = arith.negf %65 : vector<8x64xf32>
    %67 = math.exp %66 : vector<8x64xf32>
    %cst_29 = arith.constant 1.000000e+00 : f32
    %68 = vector.broadcast %cst_29 : f32 to vector<8x64xf32>
    %69 = arith.addf %68, %67 : vector<8x64xf32>
    %70 = arith.divf %68, %69 : vector<8x64xf32>
    %71 = arith.mulf %65, %70 : vector<8x64xf32>
    %72 = arith.mulf %64, %71 : vector<8x64xf32>
    %c0_30 = arith.constant 0 : index
    %c0_31 = arith.constant 0 : index
    %c0_32 = arith.constant 0 : index
    %73 = vector.load %arg10[%c0_30, %c0_31, %c0_32] : memref<2x64x32xf32, #tpu.memory_space<vmem>>, vector<1x64x32xf32>
    %74 = vector.shape_cast %73 : vector<1x64x32xf32> to vector<64x32xf32>
    %cst_33 = arith.constant dense<0.000000e+00> : vector<8x32xf32>
    %75 = tpu.matmul %72, %74, %cst_33 {dimension_numbers = #tpu.dot_dimension_numbers<[1], [0], [0], [1], [0, 0, 1, 1], [], []>} : vector<8x64xf32>, vector<64x32xf32>, vector<8x32xf32> -> vector<8x32xf32>
    %76 = arith.addf %32, %75 : vector<8x32xf32>
    %c1 = arith.constant 1 : index
    %c0_34 = arith.constant 0 : index
    %77 = vector.load %arg7[%c1, %c0_34] : memref<2x32xf32, #tpu.memory_space<vmem>>, vector<1x32xf32>
    %78 = vector.shape_cast %77 : vector<1x32xf32> to vector<32xf32>
    %c1_35 = arith.constant 1 : index
    %c0_36 = arith.constant 0 : index
    %79 = vector.load %arg8[%c1_35, %c0_36] : memref<2x32xf32, #tpu.memory_space<vmem>>, vector<1x32xf32>
    %80 = vector.shape_cast %79 : vector<1x32xf32> to vector<32xf32>
    %cst_37 = arith.constant dense<0.000000e+00> : vector<8xf32>
    %81 = vector.multi_reduction <add>, %76, %cst_37 [1] : vector<8x32xf32> to vector<8xf32>
    %82 = vector.shape_cast %81 : vector<8xf32> to vector<8x1xf32>
    %cst_38 = arith.constant 3.200000e+01 : f32
    %83 = vector.broadcast %cst_38 : f32 to vector<8x1xf32>
    %84 = arith.divf %82, %83 : vector<8x1xf32>
    %85 = vector.broadcast %84 : vector<8x1xf32> to vector<8x32xf32>
    %86 = arith.subf %76, %85 : vector<8x32xf32>
    %87 = arith.mulf %86, %86 : vector<8x32xf32>
    %cst_39 = arith.constant dense<0.000000e+00> : vector<8xf32>
    %88 = vector.multi_reduction <add>, %87, %cst_39 [1] : vector<8x32xf32> to vector<8xf32>
    %89 = vector.shape_cast %88 : vector<8xf32> to vector<8x1xf32>
    %cst_40 = arith.constant 3.200000e+01 : f32
    %90 = vector.broadcast %cst_40 : f32 to vector<8x1xf32>
    %91 = arith.divf %89, %90 : vector<8x1xf32>
    %92 = vector.broadcast %84 : vector<8x1xf32> to vector<8x32xf32>
    %93 = arith.subf %76, %92 : vector<8x32xf32>
    %cst_41 = arith.constant 9.99999974E-6 : f32
    %94 = vector.broadcast %cst_41 : f32 to vector<8x1xf32>
    %95 = arith.addf %91, %94 : vector<8x1xf32>
    %96 = math.rsqrt %95 : vector<8x1xf32>
    %97 = vector.broadcast %96 : vector<8x1xf32> to vector<8x32xf32>
    %98 = arith.mulf %93, %97 : vector<8x32xf32>
    %99 = vector.shape_cast %78 : vector<32xf32> to vector<1x32xf32>
    %100 = vector.broadcast %99 : vector<1x32xf32> to vector<8x32xf32>
    %101 = arith.mulf %98, %100 : vector<8x32xf32>
    %102 = vector.shape_cast %80 : vector<32xf32> to vector<1x32xf32>
    %103 = vector.broadcast %102 : vector<1x32xf32> to vector<8x32xf32>
    %104 = arith.addf %101, %103 : vector<8x32xf32>
    %c1_42 = arith.constant 1 : index
    %c0_43 = arith.constant 0 : index
    %c0_44 = arith.constant 0 : index
    %105 = vector.load %arg9[%c1_42, %c0_43, %c0_44] : memref<2x32x128xf32, #tpu.memory_space<vmem>>, vector<1x32x128xf32>
    %106 = vector.shape_cast %105 : vector<1x32x128xf32> to vector<32x128xf32>
    %cst_45 = arith.constant dense<0.000000e+00> : vector<8x128xf32>
    %107 = tpu.matmul %104, %106, %cst_45 {dimension_numbers = #tpu.dot_dimension_numbers<[1], [0], [0], [1], [0, 0, 1, 1], [], []>} : vector<8x32xf32>, vector<32x128xf32>, vector<8x128xf32> -> vector<8x128xf32>
    %108 = vector.extract_strided_slice %107 {offsets = [0, 0], sizes = [8, 64], strides = [1, 1]} : vector<8x128xf32> to vector<8x64xf32>
    %109 = vector.extract_strided_slice %107 {offsets = [0, 64], sizes = [8, 64], strides = [1, 1]} : vector<8x128xf32> to vector<8x64xf32>
    %110 = arith.negf %109 : vector<8x64xf32>
    %111 = math.exp %110 : vector<8x64xf32>
    %cst_46 = arith.constant 1.000000e+00 : f32
    %112 = vector.broadcast %cst_46 : f32 to vector<8x64xf32>
    %113 = arith.addf %112, %111 : vector<8x64xf32>
    %114 = arith.divf %112, %113 : vector<8x64xf32>
    %115 = arith.mulf %109, %114 : vector<8x64xf32>
    %116 = arith.mulf %108, %115 : vector<8x64xf32>
    %c1_47 = arith.constant 1 : index
    %c0_48 = arith.constant 0 : index
    %c0_49 = arith.constant 0 : index
    %117 = vector.load %arg10[%c1_47, %c0_48, %c0_49] : memref<2x64x32xf32, #tpu.memory_space<vmem>>, vector<1x64x32xf32>
    %118 = vector.shape_cast %117 : vector<1x64x32xf32> to vector<64x32xf32>
    %cst_50 = arith.constant dense<0.000000e+00> : vector<8x32xf32>
    %119 = tpu.matmul %116, %118, %cst_50 {dimension_numbers = #tpu.dot_dimension_numbers<[1], [0], [0], [1], [0, 0, 1, 1], [], []>} : vector<8x64xf32>, vector<64x32xf32>, vector<8x32xf32> -> vector<8x32xf32>
    %120 = arith.addf %76, %119 : vector<8x32xf32>
    %c0_51 = arith.constant 0 : index
    %c0_52 = arith.constant 0 : index
    %c0_53 = arith.constant 0 : index
    %121 = vector.load %arg11[%c0_51, %c0_52, %c0_53] : memref<1x8x32xf32, #tpu.memory_space<vmem>>, vector<1x8x32xf32>
    %122 = vector.shape_cast %121 : vector<1x8x32xf32> to vector<8x32xf32>
    %123 = vector.shape_cast %120 : vector<8x32xf32> to vector<1x8x32xf32>
    tpu.vector_store %arg11[%c0_51, %c0_52, %c0_53], %123 {strides = array<i32>} : memref<1x8x32xf32, #tpu.memory_space<vmem>>, vector<1x8x32xf32>,
    return
  }
  func.func @transform_0(%arg0: i32, %arg1: i32) -> (i32, i32, i32) {
    %c0_i32 = arith.constant 0 : i32
    %c0_i32_0 = arith.constant 0 : i32
    return %arg0, %arg1, %c0_i32 : i32, i32, i32
  }
  func.func @transform_1(%arg0: i32, %arg1: i32) -> (i32, i32, i32) {
    %c0_i32 = arith.constant 0 : i32
    %c0_i32_0 = arith.constant 0 : i32
    return %arg0, %arg1, %c0_i32 : i32, i32, i32
  }
  func.func @transform_2(%arg0: i32, %arg1: i32) -> (i32, i32, i32) {
    %c0_i32 = arith.constant 0 : i32
    %c0_i32_0 = arith.constant 0 : i32
    %c0_i32_1 = arith.constant 0 : i32
    return %arg0, %c0_i32, %c0_i32_0 : i32, i32, i32
  }
  func.func @transform_3(%arg0: i32, %arg1: i32) -> (i32, i32) {
    %c0_i32 = arith.constant 0 : i32
    %c0_i32_0 = arith.constant 0 : i32
    %c0_i32_1 = arith.constant 0 : i32
    return %c0_i32, %c0_i32_0 : i32, i32
  }
  func.func @transform_4(%arg0: i32, %arg1: i32) -> (i32, i32) {
    %c0_i32 = arith.constant 0 : i32
    %c0_i32_0 = arith.constant 0 : i32
    %c0_i32_1 = arith.constant 0 : i32
    return %c0_i32, %c0_i32_0 : i32, i32
  }
  func.func @transform_5(%arg0: i32, %arg1: i32) -> (i32, i32) {
    %c0_i32 = arith.constant 0 : i32
    %c0_i32_0 = arith.constant 0 : i32
    %c0_i32_1 = arith.constant 0 : i32
    return %c0_i32, %c0_i32_0 : i32, i32
  }
  func.func @transform_6(%arg0: i32, %arg1: i32) -> (i32, i32) {
    %c0_i32 = arith.constant 0 : i32
    %c0_i32_0 = arith.constant 0 : i32
    %c0_i32_1 = arith.constant 0 : i32
    return %c0_i32, %c0_i32_0 : i32, i32
  }
  func.func @transform_7(%arg0: i32, %arg1: i32) -> (i32, i32, i32) {
    %c0_i32 = arith.constant 0 : i32
    %c0_i32_0 = arith.constant 0 : i32
    %c0_i32_1 = arith.constant 0 : i32
    %c0_i32_2 = arith.constant 0 : i32
    return %c0_i32, %c0_i32_0, %c0_i32_1 : i32, i32, i32
  }
  func.func @transform_8(%arg0: i32, %arg1: i32) -> (i32, i32, i32) {
    %c0_i32 = arith.constant 0 : i32
    %c0_i32_0 = arith.constant 0 : i32
    %c0_i32_1 = arith.constant 0 : i32
    %c0_i32_2 = arith.constant 0 : i32
    return %c0_i32, %c0_i32_0, %c0_i32_1 : i32, i32, i32
  }
  func.func @transform_9(%arg0: i32, %arg1: i32) -> (i32, i32, i32) {
    %c0_i32 = arith.constant 0 : i32
    %c0_i32_0 = arith.constant 0 : i32
    return %arg0, %arg1, %c0_i32 : i32, i32, i32
  }
}

</mosaic_0001>

<llo_original>
// kernel: tpu_custom_call.1
$region0: #{tpu_custom_call.1}
  #allocation0 [shape = 'u32[]', space=smem, size = 0x4, offset = 0x4, fixed_abs, tag = 'smem constant byte address 0x4 - core index']
  #allocation1 [shape = 'u32[144,128]{1,0:T(1,128)}', space=vmem, size = 0x12000, scoped, tag = 'internal scratch']
  %s0 = inlined_call_operand.vmem [shape: f32[2,16,16], index: 0, kind: input, shape index: {}]
  %s1 = inlined_call_operand.vmem [shape: f32[2,16,16], index: 1, kind: input, shape index: {}]
  %s2 = inlined_call_operand.vmem [shape: f32[2,1,32], index: 2, kind: input, shape index: {}]
  %s3 = inlined_call_operand.vmem [shape: f32[1,32], index: 3, kind: input, shape index: {}]
  %s4 = inlined_call_operand.vmem [shape: f32[1,32], index: 4, kind: input, shape index: {}]
  %s5 = inlined_call_operand.vmem [shape: f32[2,32], index: 5, kind: input, shape index: {}]
  %s6 = inlined_call_operand.vmem [shape: f32[2,32], index: 6, kind: input, shape index: {}]
  %s7 = inlined_call_operand.vmem [shape: f32[2,32,128], index: 7, kind: input, shape index: {}]
  %s8 = inlined_call_operand.vmem [shape: f32[2,64,32], index: 8, kind: input, shape index: {}]
  %s9 = inlined_call_operand.hbm [shape: f32[2,16,32], index: 9, kind: output, shape index: {}]
  %s10 = sld [smem:[#allocation0]]
  $region69: #{tpu_custom_call.1} parent=0
    _
  %s12 = ssub.s32 1, %s10
  %s13 = scalar_select 0, %s12, %s10
  $region1: #{tpu_custom_call.1} parent=0
    #allocation2 [shape = 'u8[8192]{0}', space=vmem, size = 0x2000, scoped, tag = 'output window, operand 0']
    #allocation3 [shape = 's32[2]{0}', space=sflag, size = 0x8, scoped, tag = 'scoped memory for tpu_custom_call.1']
    %14 = vsyncpa [#allocation3], 0
    %s15 = scalar_lea.sflag [#allocation3], 1
    %16 = vsyncpa %s15, 0
    loop: start=0, step=1, limit=6
    $region2: #{tpu_custom_call.1} parent=1 // loop_pre_header
      _
    $region3: #{tpu_custom_call.1} parent=1 // loop_header
      %s18 = sphi 0, %s22
      %p19 = scmp.ge.s32.totalorder %s18, 6
      %s25 = sphi 0, %s37
      %s26 = sphi 0, %s33
      %s27 = sphi 0, %s25
      %s28 = sphi 0, %s26
      %s29 = sphi 0, %s27
      %s30 = sphi 0, %s28
      %s42 = sphi 0, %s44
      %s45 = sphi 0, %s42
      %s46 = sphi 0, %s45
      %s62 = sphi 0, %s46
      %s70 = sphi 0, %s72
      %s73 = sphi 0, %s70
      %s74 = sphi 0, %s73
      %s90 = sphi 0, %s74
      %s96 = sphi 0, %s98
      %s99 = sphi 0, %s96
      %s100 = sphi 0, %s99
      %s116 = sphi 0, %s100
      %s120 = sphi 0, %s120
      %s122 = sphi 0, %s120
      %s123 = sphi 0, %s122
      %s137 = sphi 0, %s123
      %s141 = sphi 0, %s141
      %s143 = sphi 0, %s141
      %s144 = sphi 0, %s143
      %s158 = sphi 0, %s144
      %s162 = sphi 0, %s162
      %s164 = sphi 0, %s162
      %s165 = sphi 0, %s164
      %s179 = sphi 0, %s165
      %s183 = sphi 0, %s183
      %s185 = sphi 0, %s183
      %s186 = sphi 0, %s185
      %s200 = sphi 0, %s186
      %s204 = sphi 0, %s204
      %s206 = sphi 0, %s204
      %s207 = sphi 0, %s206
      %s221 = sphi 0, %s207
      %s225 = sphi 0, %s225
      %s227 = sphi 0, %s225
      %s228 = sphi 0, %s227
      %s242 = sphi 0, %s228
      %s250 = sphi 0, %s252
      %s253 = sphi 0, %s250
      %s254 = sphi 0, %s253
      %s270 = sphi 0, %s254
    $region4: #{tpu_custom_call.1} parent=1 // loop_header_branch
      %21 = sbr.rel (%p19) target = $region8
    $region5: #{tpu_custom_call.1} parent=1 // loop_body
      %s23 = ssub.s32 %s18, 1
      %s24 = ssub.s32 %s18, 2
      %s31 = sadd.s32 1, %s26
      %p32 = scmp.ge.s32.totalorder %s31, 2
      %s33 = scalar_select %p32, 0, %s31
      %s34 = sadd.s32 1, %s25
      %s35 = scalar_select %p32, %s34, %s25
      %p36 = scmp.ge.s32.totalorder %s35, 2
      %s37 = scalar_select %p36, 0, %s35
      %s38 = ssub.s32 %s25, %s37
      %s39 = ssub.s32 %s26, %s33
      %s40 = sor.u32 %s38, %s39
      %p41 = scmp.eq.s32.totalorder %s40, 0
      %s43 = sadd.s32 %s42, 1
      %s44 = scalar_select %p41, %s42, %s43
      %p47 = pneg %p41
      %p48 = scmp.eq.s32.totalorder %s18, 3
      %p49 = por %p47, %p48
      %p50 = scmp.ne.s32.totalorder %s42, %s45
      %p51 = scmp.eq.s32.totalorder %s18, 0
      %p52 = por %p50, %p51
      %p53 = scmp.ne.s32.totalorder %s42, %s45
      %p54 = scmp.eq.s32.totalorder %s23, 3
      %p55 = por %p53, %p54
      %p56 = scmp.ne.s32.totalorder %s45, %s46
      %p57 = scmp.eq.s32.totalorder %s23, 0
      %p58 = por %p56, %p57
      %p59 = scmp.ne.s32.totalorder %s45, %s46
      %p60 = scmp.eq.s32.totalorder %s24, 3
      %p61 = por %p59, %p60
      %p63 = scmp.ne.s32.totalorder %s46, %s62
      %p64 = scmp.eq.s32.totalorder %s24, 0
      %p65 = por %p63, %p64
      %s66 = ssub.s32 %s25, %s37
      %s67 = ssub.s32 %s26, %s33
      %s68 = sor.u32 %s66, %s67
      %p69 = scmp.eq.s32.totalorder %s68, 0
      %s71 = sadd.s32 %s70, 1
      %s72 = scalar_select %p69, %s70, %s71
      %p75 = pneg %p69
      %p76 = scmp.eq.s32.totalorder %s18, 3
      %p77 = por %p75, %p76
      %p78 = scmp.ne.s32.totalorder %s70, %s73
      %p79 = scmp.eq.s32.totalorder %s18, 0
      %p80 = por %p78, %p79
      %p81 = scmp.ne.s32.totalorder %s70, %s73
      %p82 = scmp.eq.s32.totalorder %s23, 3
      %p83 = por %p81, %p82
      %p84 = scmp.ne.s32.totalorder %s73, %s74
      %p85 = scmp.eq.s32.totalorder %s23, 0
      %p86 = por %p84, %p85
      %p87 = scmp.ne.s32.totalorder %s73, %s74
      %p88 = scmp.eq.s32.totalorder %s24, 3
      %p89 = por %p87, %p88
      %p91 = scmp.ne.s32.totalorder %s74, %s90
      %p92 = scmp.eq.s32.totalorder %s24, 0
      %p93 = por %p91, %p92
      %s94 = ssub.s32 %s25, %s37
      %p95 = scmp.eq.s32.totalorder %s94, 0
      %s97 = sadd.s32 %s96, 1
      %s98 = scalar_select %p95, %s96, %s97
      %p101 = pneg %p95
      %p102 = scmp.eq.s32.totalorder %s18, 3
      %p103 = por %p101, %p102
      %p104 = scmp.ne.s32.totalorder %s96, %s99
      %p105 = scmp.eq.s32.totalorder %s18, 0
      %p106 = por %p104, %p105
      %p107 = scmp.ne.s32.totalorder %s96, %s99
      %p108 = scmp.eq.s32.totalorder %s23, 3
      %p109 = por %p107, %p108
      %p110 = scmp.ne.s32.totalorder %s99, %s100
      %p111 = scmp.eq.s32.totalorder %s23, 0
      %p112 = por %p110, %p111
      %p113 = scmp.ne.s32.totalorder %s99, %s100
      %p114 = scmp.eq.s32.totalorder %s24, 3
      %p115 = por %p113, %p114
      %p117 = scmp.ne.s32.totalorder %s100, %s116
      %p118 = scmp.eq.s32.totalorder %s24, 0
      %p119 = por %p117, %p118
      %s121 = sadd.s32 %s120, 1
      %p124 = scmp.eq.s32.totalorder %s18, 3
      %p125 = scmp.ne.s32.totalorder %s120, %s122
      %p126 = scmp.eq.s32.totalorder %s18, 0
      %p127 = por %p125, %p126
      %p128 = scmp.ne.s32.totalorder %s120, %s122
      %p129 = scmp.eq.s32.totalorder %s23, 3
      %p130 = por %p128, %p129
      %p131 = scmp.ne.s32.totalorder %s122, %s123
      %p132 = scmp.eq.s32.totalorder %s23, 0
      %p133 = por %p131, %p132
      %p134 = scmp.ne.s32.totalorder %s122, %s123
      %p135 = scmp.eq.s32.totalorder %s24, 3
      %p136 = por %p134, %p135
      %p138 = scmp.ne.s32.totalorder %s123, %s137
      %p139 = scmp.eq.s32.totalorder %s24, 0
      %p140 = por %p138, %p139
      %s142 = sadd.s32 %s141, 1
      %p145 = scmp.eq.s32.totalorder %s18, 3
      %p146 = scmp.ne.s32.totalorder %s141, %s143
      %p147 = scmp.eq.s32.totalorder %s18, 0
      %p148 = por %p146, %p147
      %p149 = scmp.ne.s32.totalorder %s141, %s143
      %p150 = scmp.eq.s32.totalorder %s23, 3
      %p151 = por %p149, %p150
      %p152 = scmp.ne.s32.totalorder %s143, %s144
      %p153 = scmp.eq.s32.totalorder %s23, 0
      %p154 = por %p152, %p153
      %p155 = scmp.ne.s32.totalorder %s143, %s144
      %p156 = scmp.eq.s32.totalorder %s24, 3
      %p157 = por %p155, %p156
      %p159 = scmp.ne.s32.totalorder %s144, %s158
      %p160 = scmp.eq.s32.totalorder %s24, 0
      %p161 = por %p159, %p160
      %s163 = sadd.s32 %s162, 1
      %p166 = scmp.eq.s32.totalorder %s18, 3
      %p167 = scmp.ne.s32.totalorder %s162, %s164
      %p168 = scmp.eq.s32.totalorder %s18, 0
      %p169 = por %p167, %p168
      %p170 = scmp.ne.s32.totalorder %s162, %s164
      %p171 = scmp.eq.s32.totalorder %s23, 3
      %p172 = por %p170, %p171
      %p173 = scmp.ne.s32.totalorder %s164, %s165
      %p174 = scmp.eq.s32.totalorder %s23, 0
      %p175 = por %p173, %p174
      %p176 = scmp.ne.s32.totalorder %s164, %s165
      %p177 = scmp.eq.s32.totalorder %s24, 3
      %p178 = por %p176, %p177
      %p180 = scmp.ne.s32.totalorder %s165, %s179
      %p181 = scmp.eq.s32.totalorder %s24, 0
      %p182 = por %p180, %p181
      %s184 = sadd.s32 %s183, 1
      %p187 = scmp.eq.s32.totalorder %s18, 3
      %p188 = scmp.ne.s32.totalorder %s183, %s185
      %p189 = scmp.eq.s32.totalorder %s18, 0
      %p190 = por %p188, %p189
      %p191 = scmp.ne.s32.totalorder %s183, %s185
      %p192 = scmp.eq.s32.totalorder %s23, 3
      %p193 = por %p191, %p192
      %p194 = scmp.ne.s32.totalorder %s185, %s186
      %p195 = scmp.eq.s32.totalorder %s23, 0
      %p196 = por %p194, %p195
      %p197 = scmp.ne.s32.totalorder %s185, %s186
      %p198 = scmp.eq.s32.totalorder %s24, 3
      %p199 = por %p197, %p198
      %p201 = scmp.ne.s32.totalorder %s186, %s200
      %p202 = scmp.eq.s32.totalorder %s24, 0
      %p203 = por %p201, %p202
      %s205 = sadd.s32 %s204, 1
      %p208 = scmp.eq.s32.totalorder %s18, 3
      %p209 = scmp.ne.s32.totalorder %s204, %s206
      %p210 = scmp.eq.s32.totalorder %s18, 0
      %p211 = por %p209, %p210
      %p212 = scmp.ne.s32.totalorder %s204, %s206
      %p213 = scmp.eq.s32.totalorder %s23, 3
      %p214 = por %p212, %p213
      %p215 = scmp.ne.s32.totalorder %s206, %s207
      %p216 = scmp.eq.s32.totalorder %s23, 0
      %p217 = por %p215, %p216
      %p218 = scmp.ne.s32.totalorder %s206, %s207
      %p219 = scmp.eq.s32.totalorder %s24, 3
      %p220 = por %p218, %p219
      %p222 = scmp.ne.s32.totalorder %s207, %s221
      %p223 = scmp.eq.s32.totalorder %s24, 0
      %p224 = por %p222, %p223
      %s226 = sadd.s32 %s225, 1
      %p229 = scmp.eq.s32.totalorder %s18, 3
      %p230 = scmp.ne.s32.totalorder %s225, %s227
      %p231 = scmp.eq.s32.totalorder %s18, 0
      %p232 = por %p230, %p231
      %p233 = scmp.ne.s32.totalorder %s225, %s227
      %p234 = scmp.eq.s32.totalorder %s23, 3
      %p235 = por %p233, %p234
      %p236 = scmp.ne.s32.totalorder %s227, %s228
      %p237 = scmp.eq.s32.totalorder %s23, 0
      %p238 = por %p236, %p237
      %p239 = scmp.ne.s32.totalorder %s227, %s228
      %p240 = scmp.eq.s32.totalorder %s24, 3
      %p241 = por %p239, %p240
      %p243 = scmp.ne.s32.totalorder %s228, %s242
      %p244 = scmp.eq.s32.totalorder %s24, 0
      %p245 = por %p243, %p244
      %s246 = ssub.s32 %s25, %s37
      %s247 = ssub.s32 %s26, %s33
      %s248 = sor.u32 %s246, %s247
      %p249 = scmp.eq.s32.totalorder %s248, 0
      %s251 = sadd.s32 %s250, 1
      %s252 = scalar_select %p249, %s250, %s251
      %p255 = pneg %p249
      %p256 = scmp.eq.s32.totalorder %s18, 3
      %p257 = por %p255, %p256
      %p258 = scmp.ne.s32.totalorder %s250, %s253
      %p259 = scmp.eq.s32.totalorder %s18, 0
      %p260 = por %p258, %p259
      %p261 = scmp.ne.s32.totalorder %s250, %s253
      %p262 = scmp.eq.s32.totalorder %s23, 3
      %p263 = por %p261, %p262
      %p264 = scmp.ne.s32.totalorder %s253, %s254
      %p265 = scmp.eq.s32.totalorder %s23, 0
      %p266 = por %p264, %p265
      %p267 = scmp.ne.s32.totalorder %s253, %s254
      %p268 = scmp.eq.s32.totalorder %s24, 3
      %p269 = por %p267, %p268
      %p271 = scmp.ne.s32.totalorder %s254, %s270
      %p272 = scmp.eq.s32.totalorder %s24, 0
      %p273 = por %p271, %p272
      %p274 = scmp.le.s32.totalorder 1, %s18
      %p275 = scmp.lt.s32.totalorder %s18, 5
      %p276 = pnand %p274, %p275
      %p277 = pneg %p276
      // Predicated region
      $region9: #{tpu_custom_call.1} parent=5 // pred_check
        _
      $region10: #{tpu_custom_call.1} parent=5 // pred_check_branch
        %279 = sbr.rel (%p276) target = $region12
      $region11: #{tpu_custom_call.1} parent=5 // pred_region
        %s280 = ssub.s32 %s18, 1
        // Predicated region
        $region13: #{tpu_custom_call.1} parent=11 // pred_check
          %p281 = pneg %p133
        $region14: #{tpu_custom_call.1} parent=11 // pred_check_branch
          %283 = sbr.rel (%p281) target = $region16
        $region15: #{tpu_custom_call.1} parent=11 // pred_region
          _
        $region16: #{tpu_custom_call.1} parent=11 // pred_fallthru
          _
        // Predicated region
        $region17: #{tpu_custom_call.1} parent=11 // pred_check
          %p284 = pneg %p154
        $region18: #{tpu_custom_call.1} parent=11 // pred_check_branch
          %286 = sbr.rel (%p284) target = $region20
        $region19: #{tpu_custom_call.1} parent=11 // pred_region
          _
        $region20: #{tpu_custom_call.1} parent=11 // pred_fallthru
          _
        // Predicated region
        $region21: #{tpu_custom_call.1} parent=11 // pred_check
          %p287 = pneg %p175
        $region22: #{tpu_custom_call.1} parent=11 // pred_check_branch
          %289 = sbr.rel (%p287) target = $region24
        $region23: #{tpu_custom_call.1} parent=11 // pred_region
          _
        $region24: #{tpu_custom_call.1} parent=11 // pred_fallthru
          _
        // Predicated region
        $region25: #{tpu_custom_call.1} parent=11 // pred_check
          %p290 = pneg %p196
        $region26: #{tpu_custom_call.1} parent=11 // pred_check_branch
          %292 = sbr.rel (%p290) target = $region28
        $region27: #{tpu_custom_call.1} parent=11 // pred_region
          _
        $region28: #{tpu_custom_call.1} parent=11 // pred_fallthru
          _
        // Predicated region
        $region29: #{tpu_custom_call.1} parent=11 // pred_check
          %p293 = pneg %p217
        $region30: #{tpu_custom_call.1} parent=11 // pred_check_branch
          %295 = sbr.rel (%p293) target = $region32
        $region31: #{tpu_custom_call.1} parent=11 // pred_region
          _
        $region32: #{tpu_custom_call.1} parent=11 // pred_fallthru
          _
        // Predicated region
        $region33: #{tpu_custom_call.1} parent=11 // pred_check
          %p296 = pneg %p238
        $region34: #{tpu_custom_call.1} parent=11 // pred_check_branch
          %298 = sbr.rel (%p296) target = $region36
        $region35: #{tpu_custom_call.1} parent=11 // pred_region
          _
        $region36: #{tpu_custom_call.1} parent=11 // pred_fallthru
          _
      $region12: #{tpu_custom_call.1} parent=5 // pred_fallthru
        _
      %p299 = scmp.lt.s32.totalorder %s18, 4
      // Predicated region
      $region37: #{tpu_custom_call.1} parent=5 // pred_check
        %p300 = pneg %p299
      $region38: #{tpu_custom_call.1} parent=5 // pred_check_branch
        %302 = sbr.rel (%p300) target = $region40
      $region39: #{tpu_custom_call.1} parent=5 // pred_region
        // Predicated region
        $region41: #{tpu_custom_call.1} parent=39 // pred_check
          %p303 = pneg %p52
        $region42: #{tpu_custom_call.1} parent=39 // pred_check_branch
          %305 = sbr.rel (%p303) target = $region44
        $region43: #{tpu_custom_call.1} parent=39 // pred_region
          %p306 = scmp.lt.s32.totalorder %s25, 1
          %s307 = scalar_select %p306, %s25, 1
          %p308 = scmp.lt.s32.totalorder %s26, 1
          %s309 = scalar_select %p308, %s26, 1
          %s310 = smul.addr %s307, 2
          %s311 = sadd.s32 %s309, %s310
          %s312 = smul.addr %s311, 8
          %s313 = scalar_lea.vmem %s0, %s312
        $region44: #{tpu_custom_call.1} parent=39 // pred_fallthru
          _
        // Predicated region
        $region45: #{tpu_custom_call.1} parent=39 // pred_check
          %p314 = pneg %p80
        $region46: #{tpu_custom_call.1} parent=39 // pred_check_branch
          %316 = sbr.rel (%p314) target = $region48
        $region47: #{tpu_custom_call.1} parent=39 // pred_region
          %p317 = scmp.lt.s32.totalorder %s25, 1
          %s318 = scalar_select %p317, %s25, 1
          %p319 = scmp.lt.s32.totalorder %s26, 1
          %s320 = scalar_select %p319, %s26, 1
          %s321 = smul.addr %s318, 2
          %s322 = sadd.s32 %s320, %s321
          %s323 = smul.addr %s322, 8
          %s324 = scalar_lea.vmem %s1, %s323
        $region48: #{tpu_custom_call.1} parent=39 // pred_fallthru
          _
        // Predicated region
        $region49: #{tpu_custom_call.1} parent=39 // pred_check
          %p325 = pneg %p106
        $region50: #{tpu_custom_call.1} parent=39 // pred_check_branch
          %327 = sbr.rel (%p325) target = $region52
        $region51: #{tpu_custom_call.1} parent=39 // pred_region
          %p328 = scmp.lt.s32.totalorder %s25, 1
          %s329 = scalar_select %p328, %s25, 1
          %s330 = scalar_lea.vmem %s2, %s329
        $region52: #{tpu_custom_call.1} parent=39 // pred_fallthru
          _
      $region40: #{tpu_custom_call.1} parent=5 // pred_fallthru
        _
      %p331 = scmp.le.s32.totalorder 1, %s18
      %p332 = scmp.lt.s32.totalorder %s18, 5
      %p333 = pnand %p331, %p332
      %p334 = pneg %p333
      // Predicated region
      $region53: #{tpu_custom_call.1} parent=5 // pred_check
        _
      $region54: #{tpu_custom_call.1} parent=5 // pred_check_branch
        %336 = sbr.rel (%p333) target = $region56
      $region55: #{tpu_custom_call.1} parent=5 // pred_region
        %s337 = ssub.s32 %s18, 1
        %p338 = scmp.lt.s32.totalorder %s27, 1
        %s339 = scalar_select %p338, %s27, 1
        %p340 = scmp.lt.s32.totalorder %s28, 1
        %s341 = scalar_select %p340, %s28, 1
        %s342 = smul.addr %s339, 2
        %s343 = sadd.s32 %s341, %s342
        %s344 = smul.addr %s343, 8
        %s345 = scalar_lea.vmem %s0, %s344
        %p346 = pneg %p58
        %p347 = pneg %p55
        %p348 = scmp.lt.s32.totalorder %s27, 1
        %s349 = scalar_select %p348, %s27, 1
        %p350 = scmp.lt.s32.totalorder %s28, 1
        %s351 = scalar_select %p350, %s28, 1
        %s352 = smul.addr %s349, 2
        %s353 = sadd.s32 %s351, %s352
        %s354 = smul.addr %s353, 8
        %s355 = scalar_lea.vmem %s1, %s354
        %p356 = pneg %p86
        %p357 = pneg %p83
        %p358 = scmp.lt.s32.totalorder %s27, 1
        %s359 = scalar_select %p358, %s27, 1
        %s360 = scalar_lea.vmem %s2, %s359
        %p361 = pneg %p112
        %p362 = pneg %p109
        %p363 = pneg %p133
        %p364 = pneg %p130
        %p365 = pneg %p154
        %p366 = pneg %p151
        %p367 = pneg %p175
        %p368 = pneg %p172
        %p369 = pneg %p196
        %p370 = pneg %p193
        %p371 = pneg %p217
        %p372 = pneg %p214
        %p373 = pneg %p238
        %p374 = pneg %p235
        %p375 = pneg %p266
        %p376 = pneg %p263
        %s377 = sand.u32 %s253, 1
        %s378 = scalar_lea.sflag [#allocation3], %s377
        %s379 = sand.u32 %s253, 1
        %s380 = smul.addr %s379, 8
        %s381 = scalar_lea.vmem [#allocation2], %s380
        %p382 = scmp.lt.s32.totalorder %s27, 1
        %s383 = scalar_select %p382, %s27, 1
        %p384 = scmp.lt.s32.totalorder %s28, 1
        %s385 = scalar_select %p384, %s28, 1
        %s386 = smul.addr %s383, 2
        %s387 = sadd.s32 %s385, %s386
        %s388 = smul.addr %s387, 8
        %s389 = scalar_lea.vmem %s0, %s388
        %p390 = scmp.lt.s32.totalorder %s27, 1
        %s391 = scalar_select %p390, %s27, 1
        %p392 = scmp.lt.s32.totalorder %s28, 1
        %s393 = scalar_select %p392, %s28, 1
        %s394 = smul.addr %s391, 2
        %s395 = sadd.s32 %s393, %s394
        %s396 = smul.addr %s395, 8
        %s397 = scalar_lea.vmem %s1, %s396
        %p398 = scmp.lt.s32.totalorder %s27, 1
        %s399 = scalar_select %p398, %s27, 1
        %s400 = scalar_lea.vmem %s2, %s399
        %v401 = vld [vmem:[%s389] sm:$0xff]
        %v402 = vld [vmem:[%s397] sm:$0xff]
        %404 = vrot.lane.b32.xlu0 %v402, 16
        %v405 = vpop.permute.xlu0 %404
        %vm407 = vcmask 130048
        %v408 = vsel %vm407, %v401, %v405
        %v409 = vld [vmem:[%s3] sm:$0x1]
        %v410 = vld [vmem:[%s4] sm:$0x1]
        %vm411 = vcmask 261120
        %v412 = vsel %vm411, %v408, 0.0
        %413 = vadd.xlane.f32.xlu0 %v412
        %v414 = vpop.xlane.xlu0 %413
        %v415 = vrcp.pop 32.0
        %v416 = vmul.f32 %v414, %v415
        %v417 = vsub.f32 %v408, %v416
        %v418 = vmul.f32 %v417, %v417
        %v419 = vsel %vm411, %v418, 0.0
        %420 = vadd.xlane.f32.xlu0 %v419
        %v421 = vpop.xlane.xlu0 %420
        %v422 = vmul.f32 %v421, %v415
        %v423 = vadd.f32 %v422, 1e-05
        %v424 = vrsqrt.pop %v423
        %v425 = vmul.f32 %v417, %v424
        %v427 = vlaneseq
        %v428 = vshrl.u32 %v427, 7
        %v429 = vsub.s32 0, %v428
        %v430 = vrot.slane %v409, %v429
        %v432 = vmul.f32 %v425, %v430
        %v434 = vlaneseq
        %v435 = vshrl.u32 %v434, 7
        %v436 = vsub.s32 0, %v435
        %v437 = vrot.slane %v410, %v436
        %v439 = vadd.f32 %v432, %v437
        %v440 = vld [vmem:[%s400] sm:$0x1]
        %v442 = vlaneseq
        %v443 = vshrl.u32 %v442, 7
        %v444 = vsub.s32 0, %v443
        %v445 = vrot.slane %v440, %v444
        %v447 = vadd.f32 %v439, %v445
        %v448 = vld [vmem:[%s5] sm:$0x1]
        %v449 = vld [vmem:[%s6] sm:$0x1]
        %v450 = vsel %vm411, %v447, 0.0
        %451 = vadd.xlane.f32.xlu0 %v450
        %v452 = vpop.xlane.xlu0 %451
        %v453 = vmul.f32 %v452, %v415
        %v454 = vsub.f32 %v447, %v453
        %v455 = vmul.f32 %v454, %v454
        %v456 = vsel %vm411, %v455, 0.0
        %457 = vadd.xlane.f32.xlu0 %v456
        %v458 = vpop.xlane.xlu0 %457
        %v459 = vmul.f32 %v458, %v415
        %v460 = vadd.f32 %v459, 1e-05
        %v461 = vrsqrt.pop %v460
        %v462 = vmul.f32 %v454, %v461
        %v463 = vlaneseq
        %v464 = vshrl.u32 %v463, 7
        %v465 = vsub.s32 0, %v464
        %v466 = vrot.slane %v448, %v465
        %v467 = vmul.f32 %v462, %v466
        %v468 = vlaneseq
        %v469 = vshrl.u32 %v468, 7
        %v470 = vsub.s32 0, %v469
        %v471 = vrot.slane %v449, %v470
        %v472 = vadd.f32 %v467, %v471
        %v473 = vld [vmem:[%s7] sm:$0xff]
        %v474 = vld [vmem:[%s7 + $0x8] sm:$0xff]
        %v475 = vld [vmem:[%s7 + $0x10] sm:$0xff]
        %v476 = vld [vmem:[%s7 + $0x18] sm:$0xff]
        %v478 = vsel %vm411, %v472, 0
        %480 = vmatprep.subr.mxu0 0.0
        %481 = vmatpush1.msra.mxu0 %v473
        %482 = vmatprep.subr.mxu0 0.0
        %483 = vmatpush1.msra.mxu0 %v474
        %484 = vmatprep.subr.mxu0 0.0
        %485 = vmatpush1.msra.mxu0 %v475
        %486 = vmatprep.subr.mxu0 0.0
        %487 = vmatpush1.msra.mxu0 %v476
        %488 = vmatprep.subr.mxu0 0.0
        %489 = vmatpush1.msra.mxu0 0.0
        %490 = vmatprep.subr.mxu0 0.0
        %491 = vmatpush1.msra.mxu0 0.0
        %492 = vmatprep.subr.mxu0 0.0
        %493 = vmatpush1.msra.mxu0 0.0
        %494 = vmatprep.subr.mxu0 0.0
        %495 = vmatpush1.msra.mxu0 0.0
        %496 = vmatprep.subr.mxu0 0.0
        %497 = vmatpush1.msra.mxu0 0.0
        %498 = vmatprep.subr.mxu0 0.0
        %499 = vmatpush1.msra.mxu0 0.0
        %500 = vmatprep.subr.mxu0 0.0
        %501 = vmatpush1.msra.mxu0 0.0
        %502 = vmatprep.subr.mxu0 0.0
        %503 = vmatpush1.msra.mxu0 0.0
        %504 = vmatprep.subr.mxu0 0.0
        %505 = vmatpush1.msra.mxu0 0.0
        %506 = vmatprep.subr.mxu0 0.0
        %507 = vmatpush1.msra.mxu0 0.0
        %508 = vmatprep.subr.mxu0 0.0
        %509 = vmatpush1.msra.mxu0 0.0
        %510 = vmatprep.subr.mxu0 0.0
        %511 = vmatpush1.msra.mxu0 0.0
        %512 = vmatprep.subr.mxu0 0.0
        %513 = vmatpush1.msra.mxu0 0.0
        %514 = vmatprep.subr.mxu0 0.0
        %515 = vmatpush1.msra.mxu0 0.0
        %516 = vmatprep.subr.mxu0 0.0
        %517 = vmatpush1.msra.mxu0 0.0
        %518 = vmatprep.subr.mxu0 0.0
        %519 = vmatpush1.msra.mxu0 0.0
        %520 = vmatprep.subr.mxu0 0.0
        %521 = vmatpush1.msra.mxu0 0.0
        %522 = vmatprep.subr.mxu0 0.0
        %523 = vmatpush1.msra.mxu0 0.0
        %524 = vmatprep.subr.mxu0 0.0
        %525 = vmatpush1.msra.mxu0 0.0
        %526 = vmatprep.subr.mxu0 0.0
        %527 = vmatpush1.msra.mxu0 0.0
        %528 = vmatprep.subr.mxu0 0.0
        %529 = vmatpush1.msra.mxu0 0.0
        %530 = vmatprep.subr.mxu0 0.0
        %531 = vmatpush1.msra.mxu0 0.0
        %532 = vmatprep.subr.mxu0 0.0
        %533 = vmatpush1.msra.mxu0 0.0
        %534 = vmatprep.subr.mxu0 0.0
        %535 = vmatpush1.msra.mxu0 0.0
        %536 = vmatprep.subr.mxu0 0.0
        %537 = vmatpush1.msra.mxu0 0.0
        %538 = vmatprep.subr.mxu0 0.0
        %539 = vmatpush1.msra.mxu0 0.0
        %540 = vmatprep.subr.mxu0 0.0
        %541 = vmatpush1.msra.mxu0 0.0
        %542 = vmatprep.subr.mxu0 0.0
        %543 = vmatpush1.msra.mxu0 0.0
        %544 = vmatprep.mubr.f32.mxu0 0.0
        %545 = vmatmul.mubr.f32.gmra.mrb[0].mxu0 %v478
        %v546 = vpop.f32.mrb[0].mxu0
        %v547 = vadd.f32 0.0, %v546
        %v548 = vpop.f32.mrb[0].mxu0
        %549 = vdwg.mxu0
        %v550 = vxor.u32 %v547, 2147483648
        %v551 = vmul.f32 %v550, 1.442695
        %v552 = vpow.pop %v551
        %v553 = vadd.f32 %v552, 1.0
        %v554 = vrcp.pop %v553
        %v555 = vmul.f32 1.0, %v554
        %v556 = vmul.f32 %v547, %v555
        %558 = vrot.lane.b32.xlu0 %v556, 64
        %v559 = vpop.permute.xlu0 %558
        %v561 = vmul.f32 %v547, %v559
        %v562 = vld [vmem:[%s8] sm:$0xff]
        %v563 = vld [vmem:[%s8 + $0x8] sm:$0xff]
        %v564 = vld [vmem:[%s8 + $0x10] sm:$0xff]
        %v565 = vld [vmem:[%s8 + $0x18] sm:$0xff]
        %v566 = vld [vmem:[%s8 + $0x20] sm:$0xff]
        %v567 = vld [vmem:[%s8 + $0x28] sm:$0xff]
        %v568 = vld [vmem:[%s8 + $0x30] sm:$0xff]
        %v569 = vld [vmem:[%s8 + $0x38] sm:$0xff]
        %vm570 = vcmask 523264
        %v572 = vsel %vm570, %v561, 0
        %574 = vmatprep.subr.mxu0 0.0
        %575 = vmatpush1.msra.mxu0 %v562
        %576 = vmatprep.subr.mxu0 0.0
        %577 = vmatpush1.msra.mxu0 %v563
        %578 = vmatprep.subr.mxu0 0.0
        %579 = vmatpush1.msra.mxu0 %v564
        %580 = vmatprep.subr.mxu0 0.0
        %581 = vmatpush1.msra.mxu0 %v565
        %582 = vmatprep.subr.mxu0 0.0
        %583 = vmatpush1.msra.mxu0 %v566
        %584 = vmatprep.subr.mxu0 0.0
        %585 = vmatpush1.msra.mxu0 %v567
        %586 = vmatprep.subr.mxu0 0.0
        %587 = vmatpush1.msra.mxu0 %v568
        %588 = vmatprep.subr.mxu0 0.0
        %589 = vmatpush1.msra.mxu0 %v569
        %590 = vmatprep.subr.mxu0 0.0
        %591 = vmatpush1.msra.mxu0 0.0
        %592 = vmatprep.subr.mxu0 0.0
        %593 = vmatpush1.msra.mxu0 0.0
        %594 = vmatprep.subr.mxu0 0.0
        %595 = vmatpush1.msra.mxu0 0.0
        %596 = vmatprep.subr.mxu0 0.0
        %597 = vmatpush1.msra.mxu0 0.0
        %598 = vmatprep.subr.mxu0 0.0
        %599 = vmatpush1.msra.mxu0 0.0
        %600 = vmatprep.subr.mxu0 0.0
        %601 = vmatpush1.msra.mxu0 0.0
        %602 = vmatprep.subr.mxu0 0.0
        %603 = vmatpush1.msra.mxu0 0.0
        %604 = vmatprep.subr.mxu0 0.0
        %605 = vmatpush1.msra.mxu0 0.0
        %606 = vmatprep.subr.mxu0 0.0
        %607 = vmatpush1.msra.mxu0 0.0
        %608 = vmatprep.subr.mxu0 0.0
        %609 = vmatpush1.msra.mxu0 0.0
        %610 = vmatprep.subr.mxu0 0.0
        %611 = vmatpush1.msra.mxu0 0.0
        %612 = vmatprep.subr.mxu0 0.0
        %613 = vmatpush1.msra.mxu0 0.0
        %614 = vmatprep.subr.mxu0 0.0
        %615 = vmatpush1.msra.mxu0 0.0
        %616 = vmatprep.subr.mxu0 0.0
        %617 = vmatpush1.msra.mxu0 0.0
        %618 = vmatprep.subr.mxu0 0.0
        %619 = vmatpush1.msra.mxu0 0.0
        %620 = vmatprep.subr.mxu0 0.0
        %621 = vmatpush1.msra.mxu0 0.0
        %622 = vmatprep.subr.mxu0 0.0
        %623 = vmatpush1.msra.mxu0 0.0
        %624 = vmatprep.subr.mxu0 0.0
        %625 = vmatpush1.msra.mxu0 0.0
        %626 = vmatprep.subr.mxu0 0.0
        %627 = vmatpush1.msra.mxu0 0.0
        %628 = vmatprep.subr.mxu0 0.0
        %629 = vmatpush1.msra.mxu0 0.0
        %630 = vmatprep.subr.mxu0 0.0
        %631 = vmatpush1.msra.mxu0 0.0
        %632 = vmatprep.subr.mxu0 0.0
        %633 = vmatpush1.msra.mxu0 0.0
        %634 = vmatprep.subr.mxu0 0.0
        %635 = vmatpush1.msra.mxu0 0.0
        %636 = vmatprep.subr.mxu0 0.0
        %637 = vmatpush1.msra.mxu0 0.0
        %638 = vmatprep.mubr.f32.mxu0 0.0
        %639 = vmatmul.mubr.f32.gmra.mrb[0].mxu0 %v572
        %v640 = vpop.f32.mrb[0].mxu0
        %v641 = vadd.f32 0.0, %v640
        %v642 = vpop.f32.mrb[0].mxu0
        %643 = vdwg.mxu0
        %v644 = vadd.f32 %v447, %v641
        %v645 = vld [vmem:[%s5 + $0x1] sm:$0x1]
        %v646 = vld [vmem:[%s6 + $0x1] sm:$0x1]
        %v647 = vsel %vm411, %v644, 0.0
        %648 = vadd.xlane.f32.xlu0 %v647
        %v649 = vpop.xlane.xlu0 %648
        %v650 = vmul.f32 %v649, %v415
        %v651 = vsub.f32 %v644, %v650
        %v652 = vmul.f32 %v651, %v651
        %v653 = vsel %vm411, %v652, 0.0
        %654 = vadd.xlane.f32.xlu0 %v653
        %v655 = vpop.xlane.xlu0 %654
        %v656 = vmul.f32 %v655, %v415
        %v657 = vadd.f32 %v656, 1e-05
        %v658 = vrsqrt.pop %v657
        %v659 = vmul.f32 %v651, %v658
        %v660 = vlaneseq
        %v661 = vshrl.u32 %v660, 7
        %v662 = vsub.s32 0, %v661
        %v663 = vrot.slane %v645, %v662
        %v664 = vmul.f32 %v659, %v663
        %v665 = vlaneseq
        %v666 = vshrl.u32 %v665, 7
        %v667 = vsub.s32 0, %v666
        %v668 = vrot.slane %v646, %v667
        %v669 = vadd.f32 %v664, %v668
        %s670 = scalar_lea.vmem %s7, 32
        %v671 = vld [vmem:[%s670] sm:$0xff]
        %v672 = vld [vmem:[%s670 + $0x8] sm:$0xff]
        %v673 = vld [vmem:[%s670 + $0x10] sm:$0xff]
        %v674 = vld [vmem:[%s670 + $0x18] sm:$0xff]
        %v676 = vsel %vm411, %v669, 0
        %678 = vmatprep.subr.mxu0 0.0
        %679 = vmatpush1.msra.mxu0 %v671
        %680 = vmatprep.subr.mxu0 0.0
        %681 = vmatpush1.msra.mxu0 %v672
        %682 = vmatprep.subr.mxu0 0.0
        %683 = vmatpush1.msra.mxu0 %v673
        %684 = vmatprep.subr.mxu0 0.0
        %685 = vmatpush1.msra.mxu0 %v674
        %686 = vmatprep.subr.mxu0 0.0
        %687 = vmatpush1.msra.mxu0 0.0
        %688 = vmatprep.subr.mxu0 0.0
        %689 = vmatpush1.msra.mxu0 0.0
        %690 = vmatprep.subr.mxu0 0.0
        %691 = vmatpush1.msra.mxu0 0.0
        %692 = vmatprep.subr.mxu0 0.0
        %693 = vmatpush1.msra.mxu0 0.0
        %694 = vmatprep.subr.mxu0 0.0
        %695 = vmatpush1.msra.mxu0 0.0
        %696 = vmatprep.subr.mxu0 0.0
        %697 = vmatpush1.msra.mxu0 0.0
        %698 = vmatprep.subr.mxu0 0.0
        %699 = vmatpush1.msra.mxu0 0.0
        %700 = vmatprep.subr.mxu0 0.0
        %701 = vmatpush1.msra.mxu0 0.0
        %702 = vmatprep.subr.mxu0 0.0
        %703 = vmatpush1.msra.mxu0 0.0
        %704 = vmatprep.subr.mxu0 0.0
        %705 = vmatpush1.msra.mxu0 0.0
        %706 = vmatprep.subr.mxu0 0.0
        %707 = vmatpush1.msra.mxu0 0.0
        %708 = vmatprep.subr.mxu0 0.0
        %709 = vmatpush1.msra.mxu0 0.0
        %710 = vmatprep.subr.mxu0 0.0
        %711 = vmatpush1.msra.mxu0 0.0
        %712 = vmatprep.subr.mxu0 0.0
        %713 = vmatpush1.msra.mxu0 0.0
        %714 = vmatprep.subr.mxu0 0.0
        %715 = vmatpush1.msra.mxu0 0.0
        %716 = vmatprep.subr.mxu0 0.0
        %717 = vmatpush1.msra.mxu0 0.0
        %718 = vmatprep.subr.mxu0 0.0
        %719 = vmatpush1.msra.mxu0 0.0
        %720 = vmatprep.subr.mxu0 0.0
        %721 = vmatpush1.msra.mxu0 0.0
        %722 = vmatprep.subr.mxu0 0.0
        %723 = vmatpush1.msra.mxu0 0.0
        %724 = vmatprep.subr.mxu0 0.0
        %725 = vmatpush1.msra.mxu0 0.0
        %726 = vmatprep.subr.mxu0 0.0
        %727 = vmatpush1.msra.mxu0 0.0
        %728 = vmatprep.subr.mxu0 0.0
        %729 = vmatpush1.msra.mxu0 0.0
        %730 = vmatprep.subr.mxu0 0.0
        %731 = vmatpush1.msra.mxu0 0.0
        %732 = vmatprep.subr.mxu0 0.0
        %733 = vmatpush1.msra.mxu0 0.0
        %734 = vmatprep.subr.mxu0 0.0
        %735 = vmatpush1.msra.mxu0 0.0
        %736 = vmatprep.subr.mxu0 0.0
        %737 = vmatpush1.msra.mxu0 0.0
        %738 = vmatprep.subr.mxu0 0.0
        %739 = vmatpush1.msra.mxu0 0.0
        %740 = vmatprep.subr.mxu0 0.0
        %741 = vmatpush1.msra.mxu0 0.0
        %742 = vmatprep.mubr.f32.mxu0 0.0
        %743 = vmatmul.mubr.f32.gmra.mrb[0].mxu0 %v676
        %v744 = vpop.f32.mrb[0].mxu0
        %v745 = vadd.f32 0.0, %v744
        %v746 = vpop.f32.mrb[0].mxu0
        %747 = vdwg.mxu0
        %v748 = vxor.u32 %v745, 2147483648
        %v749 = vmul.f32 %v748, 1.442695
        %v750 = vpow.pop %v749
        %v751 = vadd.f32 %v750, 1.0
        %v752 = vrcp.pop %v751
        %v753 = vmul.f32 1.0, %v752
        %v754 = vmul.f32 %v745, %v753
        %756 = vrot.lane.b32.xlu0 %v754, 64
        %v757 = vpop.permute.xlu0 %756
        %v759 = vmul.f32 %v745, %v757
        %s760 = scalar_lea.vmem %s8, 64
        %v761 = vld [vmem:[%s760] sm:$0xff]
        %v762 = vld [vmem:[%s760 + $0x8] sm:$0xff]
        %v763 = vld [vmem:[%s760 + $0x10] sm:$0xff]
        %v764 = vld [vmem:[%s760 + $0x18] sm:$0xff]
        %v765 = vld [vmem:[%s760 + $0x20] sm:$0xff]
        %v766 = vld [vmem:[%s760 + $0x28] sm:$0xff]
        %v767 = vld [vmem:[%s760 + $0x30] sm:$0xff]
        %v768 = vld [vmem:[%s760 + $0x38] sm:$0xff]
        %v770 = vsel %vm570, %v759, 0
        %772 = vmatprep.subr.mxu0 0.0
        %773 = vmatpush1.msra.mxu0 %v761
        %774 = vmatprep.subr.mxu0 0.0
        %775 = vmatpush1.msra.mxu0 %v762
        %776 = vmatprep.subr.mxu0 0.0
        %777 = vmatpush1.msra.mxu0 %v763
        %778 = vmatprep.subr.mxu0 0.0
        %779 = vmatpush1.msra.mxu0 %v764
        %780 = vmatprep.subr.mxu0 0.0
        %781 = vmatpush1.msra.mxu0 %v765
        %782 = vmatprep.subr.mxu0 0.0
        %783 = vmatpush1.msra.mxu0 %v766
        %784 = vmatprep.subr.mxu0 0.0
        %785 = vmatpush1.msra.mxu0 %v767
        %786 = vmatprep.subr.mxu0 0.0
        %787 = vmatpush1.msra.mxu0 %v768
        %788 = vmatprep.subr.mxu0 0.0
        %789 = vmatpush1.msra.mxu0 0.0
        %790 = vmatprep.subr.mxu0 0.0
        %791 = vmatpush1.msra.mxu0 0.0
        %792 = vmatprep.subr.mxu0 0.0
        %793 = vmatpush1.msra.mxu0 0.0
        %794 = vmatprep.subr.mxu0 0.0
        %795 = vmatpush1.msra.mxu0 0.0
        %796 = vmatprep.subr.mxu0 0.0
        %797 = vmatpush1.msra.mxu0 0.0
        %798 = vmatprep.subr.mxu0 0.0
        %799 = vmatpush1.msra.mxu0 0.0
        %800 = vmatprep.subr.mxu0 0.0
        %801 = vmatpush1.msra.mxu0 0.0
        %802 = vmatprep.subr.mxu0 0.0
        %803 = vmatpush1.msra.mxu0 0.0
        %804 = vmatprep.subr.mxu0 0.0
        %805 = vmatpush1.msra.mxu0 0.0
        %806 = vmatprep.subr.mxu0 0.0
        %807 = vmatpush1.msra.mxu0 0.0
        %808 = vmatprep.subr.mxu0 0.0
        %809 = vmatpush1.msra.mxu0 0.0
        %810 = vmatprep.subr.mxu0 0.0
        %811 = vmatpush1.msra.mxu0 0.0
        %812 = vmatprep.subr.mxu0 0.0
        %813 = vmatpush1.msra.mxu0 0.0
        %814 = vmatprep.subr.mxu0 0.0
        %815 = vmatpush1.msra.mxu0 0.0
        %816 = vmatprep.subr.mxu0 0.0
        %817 = vmatpush1.msra.mxu0 0.0
        %818 = vmatprep.subr.mxu0 0.0
        %819 = vmatpush1.msra.mxu0 0.0
        %820 = vmatprep.subr.mxu0 0.0
        %821 = vmatpush1.msra.mxu0 0.0
        %822 = vmatprep.subr.mxu0 0.0
        %823 = vmatpush1.msra.mxu0 0.0
        %824 = vmatprep.subr.mxu0 0.0
        %825 = vmatpush1.msra.mxu0 0.0
        %826 = vmatprep.subr.mxu0 0.0
        %827 = vmatpush1.msra.mxu0 0.0
        %828 = vmatprep.subr.mxu0 0.0
        %829 = vmatpush1.msra.mxu0 0.0
        %830 = vmatprep.subr.mxu0 0.0
        %831 = vmatpush1.msra.mxu0 0.0
        %832 = vmatprep.subr.mxu0 0.0
        %833 = vmatpush1.msra.mxu0 0.0
        %834 = vmatprep.subr.mxu0 0.0
        %835 = vmatpush1.msra.mxu0 0.0
        %836 = vmatprep.mubr.f32.mxu0 0.0
        %837 = vmatmul.mubr.f32.gmra.mrb[0].mxu0 %v770
        %v838 = vpop.f32.mrb[0].mxu0
        %v839 = vadd.f32 0.0, %v838
        %v840 = vpop.f32.mrb[0].mxu0
        %841 = vdwg.mxu0
        %v842 = vadd.f32 %v644, %v839
        %843 = vst.msk [vmem:[%s381] sm:$0xff] %vm411, %v842
        %s844 = sand.u32 %s253, 1
        %s845 = scalar_lea.sflag [#allocation3], %s844
        %s846 = sand.u32 %s253, 1
        %s847 = smul.addr %s846, 8
        %s848 = scalar_lea.vmem [#allocation2], %s847
        // Predicated region
        $region57: #{tpu_custom_call.1} parent=55 // pred_check
          %p849 = pneg %p263
        $region58: #{tpu_custom_call.1} parent=55 // pred_check_branch
          %851 = sbr.rel (%p849) target = $region60
        $region59: #{tpu_custom_call.1} parent=55 // pred_region
          %s853 = ssub.s32 128, 128
          %854 = vsyncadd %s845, %s853
          %s855 = smul.addr %s27, 2
          %s856 = sadd.s32 %s28, %s855
          %s857 = smul.addr %s856, 128
          %s858 = scalar_lea.hbm %s9, %s857
          %s860 = sshll.u32 %s848, 4
          %s861 = int_to_ptr.vmem [resolvable:$true] %s860
          %863 = dma.vmem_to_hbm [thread:$0]  %s861, 128, %s858, %s845
        $region60: #{tpu_custom_call.1} parent=55 // pred_fallthru
          _
      $region56: #{tpu_custom_call.1} parent=5 // pred_fallthru
        _
      %p864 = scmp.le.s32.totalorder 2, %s18
      // Predicated region
      $region61: #{tpu_custom_call.1} parent=5 // pred_check
        %p865 = pneg %p864
      $region62: #{tpu_custom_call.1} parent=5 // pred_check_branch
        %867 = sbr.rel (%p865) target = $region64
      $region63: #{tpu_custom_call.1} parent=5 // pred_region
        %s868 = ssub.s32 %s18, 2
        // Predicated region
        $region65: #{tpu_custom_call.1} parent=63 // pred_check
          %p869 = pneg %p269
        $region66: #{tpu_custom_call.1} parent=63 // pred_check_branch
          %871 = sbr.rel (%p869) target = $region68
        $region67: #{tpu_custom_call.1} parent=63 // pred_region
          %s872 = sand.u32 %s254, 1
          %s873 = scalar_lea.sflag [#allocation3], %s872
          %s874 = sand.u32 %s254, 1
          %s875 = smul.addr %s874, 8
          %s876 = scalar_lea.vmem [#allocation2], %s875
          %877 = dma.done %s873, 128
        $region68: #{tpu_custom_call.1} parent=63 // pred_fallthru
          _
      $region64: #{tpu_custom_call.1} parent=5 // pred_fallthru
        _
    $region6: #{tpu_custom_call.1} parent=1 // loop_footer
      %s22 = sadd.s32 1, %s18
    $region7: #{tpu_custom_call.1} parent=1 // loop_footer_branch
      %17 = sbr.rel target = $region3
    $region8: #{tpu_custom_call.1} parent=1 // loop_exit
      _
    %878 = vsyncpa [#allocation3], 1
    %s879 = scalar_lea.sflag [#allocation3], 1
    %880 = vsyncpa %s879, 1

</llo_original>
